<compile_context>
chip_gen: v5e
topology: v5e:2x2
jax: 0.10.0
libtpu: 0.0.40
codegen_flags: <defaults>
</compile_context>

<pallas_src>
import functools

import jax
import jax.numpy as jnp
from jax.experimental import pallas as pl
from jax.experimental.pallas import tpu as pltpu

LANE = 128
GRANULE = 16                    # row granule: safe for both f32 (8) and bf16 (16) packing
VMEM_LIMIT_BYTES = 48 << 20     # > v5e's 16 MiB scoped default, < v7x's 64 MiB physical


def _round_up(n, m):
    return ((n + m - 1) // m) * m


def mlp_kernel(x_ref, w1_ref, b1_ref, w2_ref, b2_ref, w3_ref, b3_ref, o_ref):
    """Fused 3-layer MLP on one (TILE_B, F) batch tile; weights stay VMEM-resident."""
    # In-kernel bf16 cast of x (keeps the HBM x stream at its native dtype).
    x = x_ref[...].astype(jnp.bfloat16)                                 # (TILE_B, F)

    # Layer 1: Linear(F, 64 padded->128) + ReLU  (bf16 MXU in, f32 accumulate)
    h1 = jnp.dot(x, w1_ref[...], preferred_element_type=jnp.float32) + b1_ref[...]
    h1 = jnp.maximum(h1, 0.0).astype(jnp.bfloat16)                      # (TILE_B, 128)

    # Layer 2: Linear(64->128, 32 padded->128) + ReLU
    h2 = jnp.dot(h1, w2_ref[...], preferred_element_type=jnp.float32) + b2_ref[...]
    h2 = jnp.maximum(h2, 0.0).astype(jnp.bfloat16)                      # (TILE_B, 128)

    # Layer 3: Linear(32->128, num_classes) — logits, narrow columns, no activation
    out = jnp.dot(h2, w3_ref[...], preferred_element_type=jnp.float32) + b3_ref[...]
    o_ref[...] = out.astype(o_ref.dtype)                                # (TILE_B, nc)


def prepare_params(params, compute_dtype=jnp.bfloat16):
    """One-time pad + cast of weights/biases (hoisted out of the per-call forward)."""
    w1, b1, w2, b2, w3, b3 = params
    h1_dim, h2_dim = w1.shape[1], w2.shape[1]

    h1_p = _round_up(h1_dim, LANE)
    h2_p = _round_up(h2_dim, LANE)

    cd = jnp.dtype(compute_dtype)
    w1p = jnp.pad(w1, ((0, 0), (0, h1_p - h1_dim))).astype(cd)
    b1p = jnp.pad(b1.reshape(1, -1), ((0, 0), (0, h1_p - h1_dim))).astype(jnp.float32)
    w2p = jnp.pad(w2, ((0, h1_p - h1_dim), (0, h2_p - h2_dim))).astype(cd)
    b2p = jnp.pad(b2.reshape(1, -1), ((0, 0), (0, h2_p - h2_dim))).astype(jnp.float32)
    w3p = jnp.pad(w3, ((0, h2_p - h2_dim), (0, 0))).astype(cd)          # cols stay narrow
    b3p = b3.reshape(1, -1).astype(jnp.float32)
    return w1p, b1p, w2p, b2p, w3p, b3p


def mlp_forward(x, prepared, *, tile_b=4096):
    w1p, b1p, w2p, b2p, w3p, b3p = prepared
    batch, num_features = x.shape
    h1_p, h2_p = w1p.shape[1], w2p.shape[1]
    num_classes = w3p.shape[1]

    # --- batch tiling ---
    max_tile = _round_up(batch, GRANULE)
    tile_b = min(tile_b, max_tile)
    if batch > GRANULE:                       # v7x megacore: keep grid >= 2 when possible
        tile_b = min(tile_b, _round_up(max_tile // 2, GRANULE))
    # Keep the tile footprint well under the VMEM limit (x dbl-buf + intermediates + out).
    weight_bytes = 4 * (num_features * h1_p + h1_p * h2_p + h2_p * num_classes)
    per_row_bytes = 8 * num_features + 16 * h1_p + 12 * num_classes
    budget_rows = max(GRANULE, (VMEM_LIMIT_BYTES // 2 - weight_bytes) // per_row_bytes)
    tile_b = max(GRANULE, _round_up(min(tile_b, budget_rows), GRANULE))

    batch_p = _round_up(batch, tile_b)
    xp = x if batch_p == batch else jnp.pad(x, ((0, batch_p - batch), (0, 0)))

    grid = (batch_p // tile_b,)
    const2d = lambda i: (0, 0)                 # weights/biases: VMEM-resident across steps

    out = pl.pallas_call(
        mlp_kernel,
        out_shape=jax.ShapeDtypeStruct((batch_p, num_classes), jnp.float32),
        grid=grid,
        in_specs=[
            pl.BlockSpec((tile_b, num_features), lambda i: (i, 0)),    # streamed x tile
            pl.BlockSpec((num_features, h1_p), const2d),
            pl.BlockSpec((1, h1_p), const2d),
            pl.BlockSpec((h1_p, h2_p), const2d),
            pl.BlockSpec((1, h2_p), const2d),
            pl.BlockSpec((h2_p, num_classes), const2d),
            pl.BlockSpec((1, num_classes), const2d),
        ],
        out_specs=pl.BlockSpec((tile_b, num_classes), lambda i: (i, 0)),  # narrow out tile
        compiler_params=pltpu.CompilerParams(
            dimension_semantics=("parallel",),     # megacore sharding on v7x
            vmem_limit_bytes=VMEM_LIMIT_BYTES,
        ),
    )(xp, w1p, b1p, w2p, b2p, w3p, b3p)

    return out if batch_p == batch else out[:batch]


def init_params(key, num_features, num_classes):
    # Mimics PyTorch's uniform(-1/sqrt(fan_in), 1/sqrt(fan_in)) init.
    def linear(key, fan_in, fan_out):
        kw, kb = jax.random.split(key)
        bound = 1.0 / jnp.sqrt(fan_in)
        w = jax.random.uniform(kw, (fan_in, fan_out), jnp.float32, -bound, bound)
        b = jax.random.uniform(kb, (1, fan_out), jnp.float32, -bound, bound)
        return w, b

    k1, k2, k3 = jax.random.split(key, 3)
    w1, b1 = linear(k1, num_features, 64)
    w2, b2 = linear(k2, 64, 32)
    w3, b3 = linear(k3, 32, num_classes)
    return w1, b1, w2, b2, w3, b3


def ref_forward(x, params, compute_dtype=jnp.float32):
    """Plain-JAX reference; compute_dtype mirrors the kernel's MXU input precision."""
    w1, b1, w2, b2, w3, b3 = params
    cd = compute_dtype
    h = jnp.dot(x.astype(cd), w1.astype(cd), preferred_element_type=jnp.float32) + b1
    h = jnp.maximum(h, 0.0)
    h = jnp.dot(h.astype(cd), w2.astype(cd), preferred_element_type=jnp.float32) + b2
    h = jnp.maximum(h, 0.0)
    return jnp.dot(h.astype(cd), w3.astype(cd), preferred_element_type=jnp.float32) + b3


if __name__ == "__main__":
    num_features = 32
    num_classes = 8
    batch = 8

    key = jax.random.PRNGKey(0)
    kx, kp = jax.random.split(key)

    x = jax.random.normal(kx, (batch, num_features), jnp.float32)
    params = init_params(kp, num_features, num_classes)

    # One-time weight preparation (pad + bf16 cast), outside the per-call forward.
    prepared = jax.tree_util.tree_map(lambda a: a, prepare_params(params))

    fwd = jax.jit(functools.partial(mlp_forward, tile_b=256))
    out = fwd(x, prepared)
    jax.block_until_ready(out)

    assert out.shape == (batch, num_classes)

    # Tight check vs. a reference that uses the same bf16-input / f32-accumulate math.
    ref_bf16 = ref_forward(x, params, compute_dtype=jnp.bfloat16)
    assert jnp.allclose(out, ref_bf16, atol=1e-3, rtol=1e-3)

    # Loose check vs. the full-f32 PyTorch-equivalent math (bf16 MXU input rounding).
    ref_f32 = ref_forward(x, params, compute_dtype=jnp.float32)
    assert jnp.allclose(out, ref_f32, atol=5e-2, rtol=5e-2)

    print("KERNEL_OK")
</pallas_src>

<mosaic_0001>
module attributes {stable_mosaic.version = 11 : i64} {
  func.func @mlp_kernel(%arg0: i32, %arg1: memref<16x32xf32, #tpu.memory_space<vmem>>, %arg2: memref<32x128xbf16, #tpu.memory_space<vmem>>, %arg3: memref<1x128xf32, #tpu.memory_space<vmem>>, %arg4: memref<128x128xbf16, #tpu.memory_space<vmem>>, %arg5: memref<1x128xf32, #tpu.memory_space<vmem>>, %arg6: memref<128x8xbf16, #tpu.memory_space<vmem>>, %arg7: memref<1x8xf32, #tpu.memory_space<vmem>>, %arg8: memref<16x8xf32, #tpu.memory_space<vmem>>) attributes {dimension_semantics = [#tpu.dimension_semantics<parallel>], iteration_bounds = array<i64: 1>, scalar_prefetch = 0 : i64, scratch_operands = 0 : i64, tpu.core_type = #tpu.core_type<tc>, window_params = [{transform_indices = @transform_0, window_bounds = array<i64: 16, 32>}, {pipeline_mode = #tpu.pipeline_mode<synchronous>, transform_indices = @transform_1, window_bounds = array<i64: 32, 128>}, {pipeline_mode = #tpu.pipeline_mode<synchronous>, transform_indices = @transform_2, window_bounds = array<i64: 1, 128>}, {pipeline_mode = #tpu.pipeline_mode<synchronous>, transform_indices = @transform_3, window_bounds = array<i64: 128, 128>}, {pipeline_mode = #tpu.pipeline_mode<synchronous>, transform_indices = @transform_4, window_bounds = array<i64: 1, 128>}, {pipeline_mode = #tpu.pipeline_mode<synchronous>, transform_indices = @transform_5, window_bounds = array<i64: 128, 8>}, {pipeline_mode = #tpu.pipeline_mode<synchronous>, transform_indices = @transform_6, window_bounds = array<i64: 1, 8>}, {transform_indices = @transform_7, window_bounds = array<i64: 16, 8>}]} {
    %c0 = arith.constant 0 : index
    %c0_0 = arith.constant 0 : index
    %0 = vector.load %arg1[%c0, %c0_0] : memref<16x32xf32, #tpu.memory_space<vmem>>, vector<16x32xf32>
    %1 = arith.truncf %0 : vector<16x32xf32> to vector<16x32xbf16>
    %c0_1 = arith.constant 0 : index
    %c0_2 = arith.constant 0 : index
    %2 = vector.load %arg2[%c0_1, %c0_2] : memref<32x128xbf16, #tpu.memory_space<vmem>>, vector<32x128xbf16>
    %cst = arith.constant dense<0.000000e+00> : vector<16x128xf32>
    %3 = tpu.matmul %1, %2, %cst {dimension_numbers = #tpu.dot_dimension_numbers<[1], [0], [0], [1], [0, 0, 1, 1], [], []>} : vector<16x32xbf16>, vector<32x128xbf16>, vector<16x128xf32> -> vector<16x128xf32>
    %c0_3 = arith.constant 0 : index
    %c0_4 = arith.constant 0 : index
    %4 = vector.load %arg3[%c0_3, %c0_4] : memref<1x128xf32, #tpu.memory_space<vmem>>, vector<1x128xf32>
    %5 = vector.broadcast %4 : vector<1x128xf32> to vector<16x128xf32>
    %6 = arith.addf %3, %5 : vector<16x128xf32>
    %cst_5 = arith.constant 0.000000e+00 : f32
    %7 = vector.broadcast %cst_5 : f32 to vector<16x128xf32>
    %8 = arith.maximumf %6, %7 : vector<16x128xf32>
    %9 = arith.truncf %8 : vector<16x128xf32> to vector<16x128xbf16>
    %c0_6 = arith.constant 0 : index
    %c0_7 = arith.constant 0 : index
    %10 = vector.load %arg4[%c0_6, %c0_7] : memref<128x128xbf16, #tpu.memory_space<vmem>>, vector<128x128xbf16>
    %cst_8 = arith.constant dense<0.000000e+00> : vector<16x128xf32>
    %11 = tpu.matmul %9, %10, %cst_8 {dimension_numbers = #tpu.dot_dimension_numbers<[1], [0], [0], [1], [0, 0, 1, 1], [], []>} : vector<16x128xbf16>, vector<128x128xbf16>, vector<16x128xf32> -> vector<16x128xf32>
    %c0_9 = arith.constant 0 : index
    %c0_10 = arith.constant 0 : index
    %12 = vector.load %arg5[%c0_9, %c0_10] : memref<1x128xf32, #tpu.memory_space<vmem>>, vector<1x128xf32>
    %13 = vector.broadcast %12 : vector<1x128xf32> to vector<16x128xf32>
    %14 = arith.addf %11, %13 : vector<16x128xf32>
    %cst_11 = arith.constant 0.000000e+00 : f32
    %15 = vector.broadcast %cst_11 : f32 to vector<16x128xf32>
    %16 = arith.maximumf %14, %15 : vector<16x128xf32>
    %17 = arith.truncf %16 : vector<16x128xf32> to vector<16x128xbf16>
    %c0_12 = arith.constant 0 : index
    %c0_13 = arith.constant 0 : index
    %18 = vector.load %arg6[%c0_12, %c0_13] : memref<128x8xbf16, #tpu.memory_space<vmem>>, vector<128x8xbf16>
    %cst_14 = arith.constant dense<0.000000e+00> : vector<16x8xf32>
    %19 = tpu.matmul %17, %18, %cst_14 {dimension_numbers = #tpu.dot_dimension_numbers<[1], [0], [0], [1], [0, 0, 1, 1], [], []>} : vector<16x128xbf16>, vector<128x8xbf16>, vector<16x8xf32> -> vector<16x8xf32>
    %c0_15 = arith.constant 0 : index
    %c0_16 = arith.constant 0 : index
    %20 = vector.load %arg7[%c0_15, %c0_16] : memref<1x8xf32, #tpu.memory_space<vmem>>, vector<1x8xf32>
    %21 = vector.broadcast %20 : vector<1x8xf32> to vector<16x8xf32>
    %22 = arith.addf %19, %21 : vector<16x8xf32>
    %c0_17 = arith.constant 0 : index
    %c0_18 = arith.constant 0 : index
    %23 = vector.load %arg8[%c0_17, %c0_18] : memref<16x8xf32, #tpu.memory_space<vmem>>, vector<16x8xf32>
    tpu.vector_store %arg8[%c0_17, %c0_18], %22 {strides = array<i32>} : memref<16x8xf32, #tpu.memory_space<vmem>>, vector<16x8xf32>,
    return
  }
  func.func @transform_0(%arg0: i32) -> (i32, i32) {
    %c0_i32 = arith.constant 0 : i32
    %c0_i32_0 = arith.constant 0 : i32
    return %arg0, %c0_i32 : i32, i32
  }
  func.func @transform_1(%arg0: i32) -> (i32, i32) {
    %c0_i32 = arith.constant 0 : i32
    %c0_i32_0 = arith.constant 0 : i32
    %c0_i32_1 = arith.constant 0 : i32
    return %c0_i32, %c0_i32_0 : i32, i32
  }
  func.func @transform_2(%arg0: i32) -> (i32, i32) {
    %c0_i32 = arith.constant 0 : i32
    %c0_i32_0 = arith.constant 0 : i32
    %c0_i32_1 = arith.constant 0 : i32
    return %c0_i32, %c0_i32_0 : i32, i32
  }
  func.func @transform_3(%arg0: i32) -> (i32, i32) {
    %c0_i32 = arith.constant 0 : i32
    %c0_i32_0 = arith.constant 0 : i32
    %c0_i32_1 = arith.constant 0 : i32
    return %c0_i32, %c0_i32_0 : i32, i32
  }
  func.func @transform_4(%arg0: i32) -> (i32, i32) {
    %c0_i32 = arith.constant 0 : i32
    %c0_i32_0 = arith.constant 0 : i32
    %c0_i32_1 = arith.constant 0 : i32
    return %c0_i32, %c0_i32_0 : i32, i32
  }
  func.func @transform_5(%arg0: i32) -> (i32, i32) {
    %c0_i32 = arith.constant 0 : i32
    %c0_i32_0 = arith.constant 0 : i32
    %c0_i32_1 = arith.constant 0 : i32
    return %c0_i32, %c0_i32_0 : i32, i32
  }
  func.func @transform_6(%arg0: i32) -> (i32, i32) {
    %c0_i32 = arith.constant 0 : i32
    %c0_i32_0 = arith.constant 0 : i32
    %c0_i32_1 = arith.constant 0 : i32
    return %c0_i32, %c0_i32_0 : i32, i32
  }
  func.func @transform_7(%arg0: i32) -> (i32, i32) {
    %c0_i32 = arith.constant 0 : i32
    %c0_i32_0 = arith.constant 0 : i32
    return %arg0, %c0_i32 : i32, i32
  }
}

</mosaic_0001>

<llo_original>
// kernel: mlp_forward.1
$region0: #{mlp_forward.1}
  #allocation0 [shape = 'u32[]', space=smem, size = 0x4, offset = 0x4, fixed_abs, tag = 'smem constant byte address 0x4 - core index']
  #allocation1 [shape = 'u32[72,128]{1,0:T(1,128)}', space=vmem, size = 0x9000, scoped, tag = 'internal scratch']
  %s0 = inlined_call_operand.vmem [shape: f32[16,32], index: 0, kind: input, shape index: {}]
  %s1 = inlined_call_operand.vmem [shape: bf16[32,128], index: 1, kind: input, shape index: {}]
  %s2 = inlined_call_operand.vmem [shape: f32[1,128], index: 2, kind: input, shape index: {}]
  %s3 = inlined_call_operand.vmem [shape: bf16[128,128], index: 3, kind: input, shape index: {}]
  %s4 = inlined_call_operand.vmem [shape: f32[1,128], index: 4, kind: input, shape index: {}]
  %s5 = inlined_call_operand.vmem [shape: bf16[128,8], index: 5, kind: input, shape index: {}]
  %s6 = inlined_call_operand.vmem [shape: f32[1,8], index: 6, kind: input, shape index: {}]
  %s7 = inlined_call_operand.vmem [shape: f32[16,8], index: 7, kind: output, shape index: {}]
  %s8 = sld [smem:[#allocation0]]
  $region38: #{mlp_forward.1} parent=0
    _
  %s10 = ssub.s32 1, %s8
  %s11 = scalar_select 0, %s10, %s8
  // Predicated region
  $region2: #{mlp_forward.1} parent=0 // pred_check
    _
  $region3: #{mlp_forward.1} parent=0 // pred_check_branch
    %13 = sbr.rel (0) target = $region5
  $region4: #{mlp_forward.1} parent=0 // pred_region
    _
  $region5: #{mlp_forward.1} parent=0 // pred_fallthru
    _
  // Predicated region
  $region6: #{mlp_forward.1} parent=0 // pred_check
    _
  $region7: #{mlp_forward.1} parent=0 // pred_check_branch
    %15 = sbr.rel (0) target = $region9
  $region8: #{mlp_forward.1} parent=0 // pred_region
    _
  $region9: #{mlp_forward.1} parent=0 // pred_fallthru
    _
  // Predicated region
  $region10: #{mlp_forward.1} parent=0 // pred_check
    _
  $region11: #{mlp_forward.1} parent=0 // pred_check_branch
    %17 = sbr.rel (0) target = $region13
  $region12: #{mlp_forward.1} parent=0 // pred_region
    _
  $region13: #{mlp_forward.1} parent=0 // pred_fallthru
    _
  // Predicated region
  $region14: #{mlp_forward.1} parent=0 // pred_check
    _
  $region15: #{mlp_forward.1} parent=0 // pred_check_branch
    %19 = sbr.rel (0) target = $region17
  $region16: #{mlp_forward.1} parent=0 // pred_region
    _
  $region17: #{mlp_forward.1} parent=0 // pred_fallthru
    _
  // Predicated region
  $region18: #{mlp_forward.1} parent=0 // pred_check
    _
  $region19: #{mlp_forward.1} parent=0 // pred_check_branch
    %21 = sbr.rel (0) target = $region21
  $region20: #{mlp_forward.1} parent=0 // pred_region
    _
  $region21: #{mlp_forward.1} parent=0 // pred_fallthru
    _
  // Predicated region
  $region22: #{mlp_forward.1} parent=0 // pred_check
    _
  $region23: #{mlp_forward.1} parent=0 // pred_check_branch
    %23 = sbr.rel (0) target = $region25
  $region24: #{mlp_forward.1} parent=0 // pred_region
    _
  $region25: #{mlp_forward.1} parent=0 // pred_fallthru
    _
  // Predicated region
  $region26: #{mlp_forward.1} parent=0 // pred_check
    _
  $region27: #{mlp_forward.1} parent=0 // pred_check_branch
    %25 = sbr.rel (0) target = $region29
  $region28: #{mlp_forward.1} parent=0 // pred_region
    _
  $region29: #{mlp_forward.1} parent=0 // pred_fallthru
    _
  %v27 = vld [vmem:[%s0] sm:$0xff]
  %v28 = vld [vmem:[%s0 + $0x8] sm:$0xff]
  %v29 = vpack.c.bf16 %v28, %v27
  %v30 = vld [vmem:[%s1] sm:$0xf]
  %v31 = vld [vmem:[%s1 + $0x4] sm:$0xf]
  %v32 = vld [vmem:[%s1 + $0x8] sm:$0xf]
  %v33 = vld [vmem:[%s1 + $0xc] sm:$0xf]
  %v34 = vld [vmem:[%s2] sm:$0x1]
  %v36 = vperm.slane %v34, 0
  %v42 = vunpack.c.l.b16 %v30
  %v43 = vunpack.c.l.b16 %v31
  %v44 = vunpack.c.l.b16 %v32
  %v45 = vunpack.c.l.b16 %v33
  %v46 = vpack.c.b16 %v43, %v42
  %v47 = vpack.c.b16 %v45, %v44
  %vm50 = vcmask 261120
  %v52 = vsel %vm50, %v29, 0
  %54 = vmatpush.bf16.msra.mxu0 0
  %55 = vmatpush.bf16.msra.mxu0 0
  %56 = vmatpush.bf16.msra.mxu0 0
  %57 = vmatpush.bf16.msra.mxu0 0
  %58 = vmatpush.bf16.msra.mxu0 0
  %59 = vmatpush.bf16.msra.mxu0 0
  %60 = vmatpush.bf16.msra.mxu0 %v47
  %61 = vmatpush.bf16.msra.mxu0 %v46
  %62 = vmatmul.bf16.gmra.mxu0 %v52
  %v63 = vpop.f32.mrf.mxu0
  %v64 = vadd.f32 %v36, %v63
  %v65 = vpop.f32.mrf.mxu0
  %v66 = vadd.f32 %v36, %v65
  %67 = vdwg.mxu0
  %v68 = vmax.f32 %v64, 0.0
  %v69 = vmax.f32 %v66, 0.0
  %v70 = vpack.c.bf16 %v69, %v68
  %v71 = vld [vmem:[%s3] sm:$0xf]
  %v72 = vld [vmem:[%s3 + $0x4] sm:$0xf]
  %v73 = vld [vmem:[%s3 + $0x8] sm:$0xf]
  %v74 = vld [vmem:[%s3 + $0xc] sm:$0xf]
  %v75 = vld [vmem:[%s3 + $0x10] sm:$0xf]
  %v76 = vld [vmem:[%s3 + $0x14] sm:$0xf]
  %v77 = vld [vmem:[%s3 + $0x18] sm:$0xf]
  %v78 = vld [vmem:[%s3 + $0x1c] sm:$0xf]
  %v79 = vld [vmem:[%s3 + $0x20] sm:$0xf]
  %v80 = vld [vmem:[%s3 + $0x24] sm:$0xf]
  %v81 = vld [vmem:[%s3 + $0x28] sm:$0xf]
  %v82 = vld [vmem:[%s3 + $0x2c] sm:$0xf]
  %v83 = vld [vmem:[%s3 + $0x30] sm:$0xf]
  %v84 = vld [vmem:[%s3 + $0x34] sm:$0xf]
  %v85 = vld [vmem:[%s3 + $0x38] sm:$0xf]
  %v86 = vld [vmem:[%s3 + $0x3c] sm:$0xf]
  %v87 = vld [vmem:[%s4] sm:$0x1]
  %v89 = vperm.slane %v87, 0
  %v107 = vunpack.c.l.b16 %v71
  %v108 = vunpack.c.l.b16 %v72
  %v109 = vunpack.c.l.b16 %v73
  %v110 = vunpack.c.l.b16 %v74
  %v111 = vunpack.c.l.b16 %v75
  %v112 = vunpack.c.l.b16 %v76
  %v113 = vunpack.c.l.b16 %v77
  %v114 = vunpack.c.l.b16 %v78
  %v115 = vunpack.c.l.b16 %v79
  %v116 = vunpack.c.l.b16 %v80
  %v117 = vunpack.c.l.b16 %v81
  %v118 = vunpack.c.l.b16 %v82
  %v119 = vunpack.c.l.b16 %v83
  %v120 = vunpack.c.l.b16 %v84
  %v121 = vunpack.c.l.b16 %v85
  %v122 = vunpack.c.l.b16 %v86
  %v123 = vpack.c.b16 %v108, %v107
  %v124 = vpack.c.b16 %v110, %v109
  %v125 = vpack.c.b16 %v112, %v111
  %v126 = vpack.c.b16 %v114, %v113
  %v127 = vpack.c.b16 %v116, %v115
  %v128 = vpack.c.b16 %v118, %v117
  %v129 = vpack.c.b16 %v120, %v119
  %v130 = vpack.c.b16 %v122, %v121
  %139 = vmatpush.bf16.msra.mxu0 %v130
  %140 = vmatpush.bf16.msra.mxu0 %v129
  %141 = vmatpush.bf16.msra.mxu0 %v128
  %142 = vmatpush.bf16.msra.mxu0 %v127
  %143 = vmatpush.bf16.msra.mxu0 %v126
  %144 = vmatpush.bf16.msra.mxu0 %v125
  %145 = vmatpush.bf16.msra.mxu0 %v124
  %146 = vmatpush.bf16.msra.mxu0 %v123
  %147 = vmatmul.bf16.gmra.mxu0 %v70
  %v148 = vpop.f32.mrf.mxu0
  %v149 = vadd.f32 %v89, %v148
  %v150 = vpop.f32.mrf.mxu0
  %v151 = vadd.f32 %v89, %v150
  %152 = vdwg.mxu0
  %v153 = vmax.f32 %v149, 0.0
  %v154 = vmax.f32 %v151, 0.0
  %v155 = vpack.c.bf16 %v154, %v153
  %v156 = vld [vmem:[%s5] sm:$0xf]
  %v157 = vld [vmem:[%s5 + $0x4] sm:$0xf]
  %v158 = vld [vmem:[%s5 + $0x8] sm:$0xf]
  %v159 = vld [vmem:[%s5 + $0xc] sm:$0xf]
  %v160 = vld [vmem:[%s5 + $0x10] sm:$0xf]
  %v161 = vld [vmem:[%s5 + $0x14] sm:$0xf]
  %v162 = vld [vmem:[%s5 + $0x18] sm:$0xf]
  %v163 = vld [vmem:[%s5 + $0x1c] sm:$0xf]
  %v164 = vld [vmem:[%s5 + $0x20] sm:$0xf]
  %v165 = vld [vmem:[%s5 + $0x24] sm:$0xf]
  %v166 = vld [vmem:[%s5 + $0x28] sm:$0xf]
  %v167 = vld [vmem:[%s5 + $0x2c] sm:$0xf]
  %v168 = vld [vmem:[%s5 + $0x30] sm:$0xf]
  %v169 = vld [vmem:[%s5 + $0x34] sm:$0xf]
  %v170 = vld [vmem:[%s5 + $0x38] sm:$0xf]
  %v171 = vld [vmem:[%s5 + $0x3c] sm:$0xf]
  %v172 = vld [vmem:[%s6] sm:$0x1]
  %v174 = vperm.slane %v172, 0
  %v192 = vunpack.c.l.b16 %v156
  %v193 = vunpack.c.l.b16 %v157
  %v194 = vunpack.c.l.b16 %v158
  %v195 = vunpack.c.l.b16 %v159
  %v196 = vunpack.c.l.b16 %v160
  %v197 = vunpack.c.l.b16 %v161
  %v198 = vunpack.c.l.b16 %v162
  %v199 = vunpack.c.l.b16 %v163
  %v200 = vunpack.c.l.b16 %v164
  %v201 = vunpack.c.l.b16 %v165
  %v202 = vunpack.c.l.b16 %v166
  %v203 = vunpack.c.l.b16 %v167
  %v204 = vunpack.c.l.b16 %v168
  %v205 = vunpack.c.l.b16 %v169
  %v206 = vunpack.c.l.b16 %v170
  %v207 = vunpack.c.l.b16 %v171
  %v208 = vpack.c.b16 %v193, %v192
  %v209 = vpack.c.b16 %v195, %v194
  %v210 = vpack.c.b16 %v197, %v196
  %v211 = vpack.c.b16 %v199, %v198
  %v212 = vpack.c.b16 %v201, %v200
  %v213 = vpack.c.b16 %v203, %v202
  %v214 = vpack.c.b16 %v205, %v204
  %v215 = vpack.c.b16 %v207, %v206
  %224 = vmatpush.bf16.msra.mxu0 %v215
  %225 = vmatpush.bf16.msra.mxu0 %v214
  %226 = vmatpush.bf16.msra.mxu0 %v213
  %227 = vmatpush.bf16.msra.mxu0 %v212
  %228 = vmatpush.bf16.msra.mxu0 %v211
  %229 = vmatpush.bf16.msra.mxu0 %v210
  %230 = vmatpush.bf16.msra.mxu0 %v209
  %231 = vmatpush.bf16.msra.mxu0 %v208
  %232 = vmatmul.bf16.gmra.mxu0 %v155
  %v233 = vpop.f32.mrf.mxu0
  %v234 = vadd.f32 %v174, %v233
  %v235 = vpop.f32.mrf.mxu0
  %v236 = vadd.f32 %v174, %v235
  %237 = vdwg.mxu0
  %vm238 = vcmask 64512
  %239 = vst.msk [vmem:[%s7] sm:$0xff] %vm238, %v234
  %240 = vst.msk [vmem:[%s7 + $0x8] sm:$0xff] %vm238, %v236
  // Predicated region
  $region30: #{mlp_forward.1} parent=0 // pred_check
    _
  $region31: #{mlp_forward.1} parent=0 // pred_check_branch
    %242 = sbr.rel (0) target = $region33
  $region32: #{mlp_forward.1} parent=0 // pred_region
    _
  $region33: #{mlp_forward.1} parent=0 // pred_fallthru
    _
  // Predicated region
  $region34: #{mlp_forward.1} parent=0 // pred_check
    _
  $region35: #{mlp_forward.1} parent=0 // pred_check_branch
    %244 = sbr.rel (0) target = $region37
  $region36: #{mlp_forward.1} parent=0 // pred_region
    _
  $region37: #{mlp_forward.1} parent=0 // pred_fallthru
    _

</llo_original>
